<compile_context>
chip_gen: v6e
topology: v6e:2x2x1
jax: 0.10.0
libtpu: 0.0.40
codegen_flags: <defaults>
</compile_context>

<pallas_src>
import functools

import jax
import jax.numpy as jnp
from jax.experimental import pallas as pl
from jax.experimental.pallas import tpu as pltpu


# ---------------------------------------------------------------------------
# helpers
# ---------------------------------------------------------------------------
def _round_up(x, m):
    return ((x + m - 1) // m) * m


def _sublane_quantum(dtype):
    # dtype-dependent sublane packing quantum: f32 -> 8, bf16 -> 16, int8/fp8 -> 32
    return {4: 8, 2: 16, 1: 32}.get(jnp.dtype(dtype).itemsize, 8)


def _vmem_cap_bytes():
    """~85% of physical per-TensorCore VMEM; never request the whole thing
    (the compiler needs internal scratch / double buffers)."""
    try:
        cap = int(pltpu.get_tpu_info().vmem_capacity_bytes)
    except Exception:
        cap = 64 * 1024 * 1024   # conservative (v7x) if the query is unavailable
    return int(cap * 0.85)


def _pick_tile(total, target, quantum):
    """Largest block <= target that is a multiple of `quantum` and divides
    `total`; falls back to the full axis (always a legal block shape).
    # TODO(synk): replace the full-axis fallback with a padded/cdiv grid and a
    # masked tail for very large, non-128-divisible spatial sizes."""
    if total <= target:
        return total
    t = (target // quantum) * quantum
    while t >= quantum:
        if total % t == 0:
            return t
        t -= quantum
    return total


# ---------------------------------------------------------------------------
# Fused kernel: one image per grid step (single read of z, single write).
# ---------------------------------------------------------------------------
def _fused_kernel(z_ref, snr_ref,
                  w1m_ref, w1sm_ref, b1m_ref, w2m_ref, b2m_ref,
                  w1a_ref, w1sa_ref, b1a_ref, w2a_ref, b2a_ref,
                  out_ref, *, inv_spatial):
    n = pl.program_id(0)
    z = z_ref[0]                                               # (C, S), z dtype

    # f32 spatial mean; per-channel values land on the sublane axis -> (C, 1),
    # which is exactly the layout needed for the final broadcast (no relayout).
    z_mean = jnp.sum(z, axis=-1, keepdims=True, dtype=jnp.float32) * inv_spatial
    snr = snr_ref[n].astype(jnp.float32)                       # scalar from SMEM

    def head(w1z, w1s, b1, w2, b2):
        # Weights kept in PyTorch (out, in) layout so the MLP runs in column
        # orientation:  h = W1z @ z_mean + SNR * w1_snr + b1 ; out = W2 @ h + b2.
        # The SNR column contributes via a broadcast multiply (no K=1 matmul).
        h = jnp.dot(w1z[...], z_mean, preferred_element_type=jnp.float32)
        h = h + snr * w1s[...] + b1[...]
        h = jnp.maximum(h, 0.0)                                # ReLU
        return jnp.dot(w2[...], h, preferred_element_type=jnp.float32) + b2[...]

    factor = jax.nn.sigmoid(
        head(w1m_ref, w1sm_ref, b1m_ref, w2m_ref, b2m_ref))    # (C, 1) f32
    addition = head(w1a_ref, w1sa_ref, b1a_ref, w2a_ref, b2a_ref)

    # Apply from the already-resident block; factor/add stay f32, cast on store.
    out_ref[0] = (z * factor + addition).astype(out_ref.dtype)


# ---------------------------------------------------------------------------
# Two-pass fallback kernels.
# ---------------------------------------------------------------------------
def _spatial_sum_kernel(z_ref, sum_ref, acc_ref):
    """Pure streaming reduce: z (1, C, Sb) -> per-image channel sums (C, 1)."""
    s = pl.program_id(1)

    @pl.when(s == 0)
    def _():
        acc_ref[...] = jnp.zeros_like(acc_ref)

    acc_ref[...] += jnp.sum(z_ref[0], axis=-1, keepdims=True, dtype=jnp.float32)

    @pl.when(s == pl.num_programs(1) - 1)
    def _():
        sum_ref[0] = acc_ref[...]


def _apply_kernel(z_ref, f_ref, a_ref, out_ref):
    # factor/add are f32; math happens in f32 and only the store is cast.
    out_ref[...] = (z_ref[...] * f_ref[...] + a_ref[...]).astype(out_ref.dtype)


# ---------------------------------------------------------------------------
# Wrapper
# ---------------------------------------------------------------------------
def modulation_forward(z_nchw, snr, params, *, spatial_tile=2048, row_tile=512,
                       force_two_pass=False):
    """z_nchw: (N, C, H, W); snr: (N, 1) or (N,). Matches modulation.forward."""
    (w1_m, b1_m, w2_m, b2_m, w1_a, b1_a, w2_a, b2_a) = params
    N, C, H, W = z_nchw.shape
    S = H * W
    dt = z_nchw.dtype
    itemsize = jnp.dtype(dt).itemsize
    q = _sublane_quantum(dt)
    cap = _vmem_cap_bytes()

    z3 = z_nchw.reshape(N, C, S)
    snr_vec = jnp.asarray(snr, jnp.float32).reshape(-1)        # (N,) f32 -> SMEM

    # Column-layout (PyTorch (out, in)) parameters for the fused kernel.
    w1zm, w1sm = w1_m[:, :C], w1_m[:, C:C + 1]                 # (C,C), (C,1)
    w1za, w1sa = w1_a[:, :C], w1_a[:, C:C + 1]
    b1mc, b2mc = b1_m[:, None], b2_m[:, None]                  # (C,1)
    b1ac, b2ac = b1_a[:, None], b2_a[:, None]

    # ----------------------- fused-path feasibility --------------------------
    C_pad = _round_up(C, q)
    S_pad = _round_up(S, 128)
    slab = C_pad * S_pad * itemsize                            # one image of z
    Cp8, Cp128 = _round_up(C, 8), _round_up(C, 128)
    w_bytes = 4 * Cp8 * Cp128 * 4 + 8 * Cp8 * 128 * 4          # padded f32 params
    fused_need = 4 * slab + 2 * w_bytes + (4 << 20)            # 2x in + 2x out bufs
    use_fused = (not force_two_pass) and fused_need <= cap

    if use_fused:
        idx_img = lambda n: (n, 0, 0)
        idx_w = lambda n: (0, 0)
        kernel = functools.partial(_fused_kernel, inv_spatial=float(1.0 / S))
        out3 = pl.pallas_call(
            kernel,
            out_shape=jax.ShapeDtypeStruct((N, C, S), dt),
            grid_spec=pltpu.PrefetchScalarGridSpec(
                num_scalar_prefetch=0,
                grid=(N,),
                in_specs=[pl.BlockSpec((1, C, S), idx_img),
                          pl.BlockSpec(memory_space=pltpu.MemorySpace.SMEM),
                          pl.BlockSpec((C, C), idx_w), pl.BlockSpec((C, 1), idx_w),
                          pl.BlockSpec((C, 1), idx_w), pl.BlockSpec((C, C), idx_w),
                          pl.BlockSpec((C, 1), idx_w),
                          pl.BlockSpec((C, C), idx_w), pl.BlockSpec((C, 1), idx_w),
                          pl.BlockSpec((C, 1), idx_w), pl.BlockSpec((C, C), idx_w),
                          pl.BlockSpec((C, 1), idx_w)],
                out_specs=pl.BlockSpec((1, C, S), idx_img)),
            compiler_params=pltpu.CompilerParams(
                dimension_semantics=("parallel",),
                vmem_limit_bytes=int(min(cap, max(fused_need, 32 << 20)))),
        )(z3, snr_vec,
          w1zm, w1sm, b1mc, w2_m, b2mc,
          w1za, w1sa, b1ac, w2_a, b2ac)
        return out3.reshape(N, C, H, W)

    # ======================= two-pass fallback ===============================
    # ------------------ pass 1: streaming spatial sums -----------------------
    # Keep 2x double-buffered z blocks well under the VMEM cap even for huge C.
    max_sb = max(128, ((cap // 4) // max(C_pad * itemsize, 1)) // 128 * 128)
    sb_r = _pick_tile(S, min(spatial_tile, max_sb), 128)
    zblk = C_pad * _round_up(sb_r, 128) * itemsize
    p1_need = 2 * zblk + (4 << 20)
    # TODO(synk): for v7x with very small N, shard the spatial reduce across
    # both TensorCores (partial sums combined in the wrapper).
    z_sum = pl.pallas_call(
        _spatial_sum_kernel,
        out_shape=jax.ShapeDtypeStruct((N, C, 1), jnp.float32),
        grid_spec=pltpu.PrefetchScalarGridSpec(
            num_scalar_prefetch=0,
            grid=(N, S // sb_r),
            in_specs=[pl.BlockSpec((1, C, sb_r), lambda n, s: (n, 0, s))],
            out_specs=pl.BlockSpec((1, C, 1), lambda n, s: (n, 0, 0)),
            scratch_shapes=[pltpu.VMEM((C, 1), jnp.float32)]),
        compiler_params=pltpu.CompilerParams(
            dimension_semantics=("parallel", "arbitrary"),
            vmem_limit_bytes=int(min(cap, max(p1_need, 32 << 20)))),
    )(z3)

    # -------- tiny MLPs: batched over N in plain XLA (fills the MXU M-dim) ---
    z_mean = z_sum.reshape(N, C) * (1.0 / S)
    z_cat = jnp.concatenate([z_mean, snr_vec[:, None]], axis=-1)      # (N, C+1)
    hm = jnp.maximum(z_cat @ w1_m.T + b1_m, 0.0)
    factor = jax.nn.sigmoid(hm @ w2_m.T + b2_m)                       # (N, C) f32
    ha = jnp.maximum(z_cat @ w1_a.T + b1_a, 0.0)
    addition = ha @ w2_a.T + b2_a                                     # (N, C) f32

    # ------------------ pass 2: out = z * factor + addition ------------------
    R = N * C
    z2 = z3.reshape(R, S)
    factor2 = factor.reshape(R, 1)       # keep f32; only the store is cast
    add2 = addition.reshape(R, 1)

    rb = _pick_tile(R, row_tile, q)
    sb_a = _pick_tile(S, spatial_tile, 128)
    blk = _round_up(rb, q) * _round_up(sb_a, 128) * itemsize
    fa_blk = _round_up(rb, 8) * 128 * 4
    p2_need = 4 * blk + 4 * fa_blk + (4 << 20)

    out2 = pl.pallas_call(
        _apply_kernel,
        out_shape=jax.ShapeDtypeStruct((R, S), dt),
        grid_spec=pltpu.PrefetchScalarGridSpec(
            num_scalar_prefetch=0,
            grid=(R // rb, S // sb_a),
            in_specs=[pl.BlockSpec((rb, sb_a), lambda r, s: (r, s)),
                      pl.BlockSpec((rb, 1), lambda r, s: (r, 0)),
                      pl.BlockSpec((rb, 1), lambda r, s: (r, 0))],
            out_specs=pl.BlockSpec((rb, sb_a), lambda r, s: (r, s))),
        compiler_params=pltpu.CompilerParams(
            dimension_semantics=("parallel", "parallel"),
            vmem_limit_bytes=int(min(cap, max(p2_need, 32 << 20)))),
    )(z2, factor2, add2)

    return out2.reshape(N, C, H, W)


# ---------------------------------------------------------------------------
# Parameters (PyTorch layout) & pure-JAX reference
# ---------------------------------------------------------------------------
def init_params(key, C):
    """Per head: Linear(C+1, C) then Linear(C, C); weights (out, in), biases (out,)."""
    ks = jax.random.split(key, 4)
    s = 0.1
    w1_m = jax.random.normal(ks[0], (C, C + 1), jnp.float32) * s
    b1_m = jnp.full((C,), 0.01, jnp.float32)
    w2_m = jax.random.normal(ks[1], (C, C), jnp.float32) * s
    b2_m = jnp.full((C,), 0.02, jnp.float32)
    w1_a = jax.random.normal(ks[2], (C, C + 1), jnp.float32) * s
    b1_a = jnp.full((C,), -0.01, jnp.float32)
    w2_a = jax.random.normal(ks[3], (C, C), jnp.float32) * s
    b2_a = jnp.full((C,), -0.02, jnp.float32)
    return (w1_m, b1_m, w2_m, b2_m, w1_a, b1_a, w2_a, b2_a)


def reference_forward(z, snr, params):
    """Pure-JAX reference matching the PyTorch module semantics."""
    (w1_m, b1_m, w2_m, b2_m, w1_a, b1_a, w2_a, b2_a) = params
    N = z.shape[0]
    z_mean = jnp.mean(z, axis=(-2, -1))                        # (N, C)
    z_cat = jnp.concatenate([z_mean, snr.reshape(N, 1)], axis=-1)
    hm = jnp.maximum(z_cat @ w1_m.T + b1_m, 0.0)
    factor = jax.nn.sigmoid(hm @ w2_m.T + b2_m)                # (N, C)
    ha = jnp.maximum(z_cat @ w1_a.T + b1_a, 0.0)
    addition = ha @ w2_a.T + b2_a                              # (N, C)
    return z * factor[:, :, None, None] + addition[:, :, None, None]


if __name__ == "__main__":
    key = jax.random.PRNGKey(0)
    kz, ksnr, kp = jax.random.split(key, 3)

    N, C, H, W = 2, 4, 16, 16
    z = jax.random.normal(kz, (N, C, H, W), jnp.float32)
    snr = jax.random.uniform(ksnr, (N, 1), jnp.float32) * 20.0   # SNR in dB
    params = init_params(kp, C)

    ref = reference_forward(z, snr, params)

    # Default: fused single-read path (per-image slab resident in VMEM).
    out_fused = jax.block_until_ready(modulation_forward(z, snr, params))
    assert out_fused.shape == (N, C, H, W)
    assert jnp.allclose(out_fused, ref, atol=5e-5, rtol=5e-5), "fused path mismatch"

    # Also exercise the streaming two-pass fallback with multi-step grids.
    out_2p = jax.block_until_ready(
        modulation_forward(z, snr, params, spatial_tile=128, row_tile=8,
                           force_two_pass=True))
    assert jnp.allclose(out_2p, ref, atol=5e-5, rtol=5e-5), "two-pass path mismatch"

    print("KERNEL_OK")
</pallas_src>

<mosaic_0001>
module attributes {stable_mosaic.version = 11 : i64} {
  func.func @_fused_kernel(%arg0: i32, %arg1: memref<1x4x256xf32, #tpu.memory_space<vmem>>, %arg2: memref<2xf32, #tpu.memory_space<smem>>, %arg3: memref<4x4xf32, #tpu.memory_space<vmem>>, %arg4: memref<4x1xf32, #tpu.memory_space<vmem>>, %arg5: memref<4x1xf32, #tpu.memory_space<vmem>>, %arg6: memref<4x4xf32, #tpu.memory_space<vmem>>, %arg7: memref<4x1xf32, #tpu.memory_space<vmem>>, %arg8: memref<4x4xf32, #tpu.memory_space<vmem>>, %arg9: memref<4x1xf32, #tpu.memory_space<vmem>>, %arg10: memref<4x1xf32, #tpu.memory_space<vmem>>, %arg11: memref<4x4xf32, #tpu.memory_space<vmem>>, %arg12: memref<4x1xf32, #tpu.memory_space<vmem>>, %arg13: memref<1x4x256xf32, #tpu.memory_space<vmem>>) attributes {dimension_semantics = [#tpu.dimension_semantics<parallel>], iteration_bounds = array<i64: 2>, scalar_prefetch = 0 : i64, scratch_operands = 0 : i64, tpu.core_type = #tpu.core_type<tc>, window_params = [{transform_indices = @transform_0, window_bounds = array<i64: 1, 4, 256>}, {transform_indices = @transform_1, window_bounds = array<i64: 2>}, {pipeline_mode = #tpu.pipeline_mode<synchronous>, transform_indices = @transform_2, window_bounds = array<i64: 4, 4>}, {pipeline_mode = #tpu.pipeline_mode<synchronous>, transform_indices = @transform_3, window_bounds = array<i64: 4, 1>}, {pipeline_mode = #tpu.pipeline_mode<synchronous>, transform_indices = @transform_4, window_bounds = array<i64: 4, 1>}, {pipeline_mode = #tpu.pipeline_mode<synchronous>, transform_indices = @transform_5, window_bounds = array<i64: 4, 4>}, {pipeline_mode = #tpu.pipeline_mode<synchronous>, transform_indices = @transform_6, window_bounds = array<i64: 4, 1>}, {pipeline_mode = #tpu.pipeline_mode<synchronous>, transform_indices = @transform_7, window_bounds = array<i64: 4, 4>}, {pipeline_mode = #tpu.pipeline_mode<synchronous>, transform_indices = @transform_8, window_bounds = array<i64: 4, 1>}, {pipeline_mode = #tpu.pipeline_mode<synchronous>, transform_indices = @transform_9, window_bounds = array<i64: 4, 1>}, {pipeline_mode = #tpu.pipeline_mode<synchronous>, transform_indices = @transform_10, window_bounds = array<i64: 4, 4>}, {pipeline_mode = #tpu.pipeline_mode<synchronous>, transform_indices = @transform_11, window_bounds = array<i64: 4, 1>}, {transform_indices = @transform_12, window_bounds = array<i64: 1, 4, 256>}]} {
    %c0 = arith.constant 0 : index
    %c0_0 = arith.constant 0 : index
    %c0_1 = arith.constant 0 : index
    %0 = vector.load %arg1[%c0, %c0_0, %c0_1] : memref<1x4x256xf32, #tpu.memory_space<vmem>>, vector<1x4x256xf32>
    %1 = vector.shape_cast %0 : vector<1x4x256xf32> to vector<4x256xf32>
    %cst = arith.constant dense<0.000000e+00> : vector<4xf32>
    %2 = vector.multi_reduction <add>, %1, %cst [1] : vector<4x256xf32> to vector<4xf32>
    %3 = vector.shape_cast %2 : vector<4xf32> to vector<4x1xf32>
    %cst_2 = arith.constant 3.906250e-03 : f32
    %4 = vector.broadcast %cst_2 : f32 to vector<4x1xf32>
    %5 = arith.mulf %3, %4 : vector<4x1xf32>
    %6 = arith.index_cast %arg0 : i32 to index
    %7 = memref.load %arg2[%6] : memref<2xf32, #tpu.memory_space<smem>>
    %c0_3 = arith.constant 0 : index
    %c0_4 = arith.constant 0 : index
    %8 = vector.load %arg3[%c0_3, %c0_4] : memref<4x4xf32, #tpu.memory_space<vmem>>, vector<4x4xf32>
    %cst_5 = arith.constant dense<0.000000e+00> : vector<4x1xf32>
    %9 = tpu.matmul %8, %5, %cst_5 {dimension_numbers = #tpu.dot_dimension_numbers<[1], [0], [0], [1], [0, 0, 1, 1], [], []>} : vector<4x4xf32>, vector<4x1xf32>, vector<4x1xf32> -> vector<4x1xf32>
    %c0_6 = arith.constant 0 : index
    %c0_7 = arith.constant 0 : index
    %10 = vector.load %arg4[%c0_6, %c0_7] : memref<4x1xf32, #tpu.memory_space<vmem>>, vector<4x1xf32>
    %11 = vector.broadcast %7 : f32 to vector<4x1xf32>
    %12 = arith.mulf %11, %10 : vector<4x1xf32>
    %13 = arith.addf %9, %12 : vector<4x1xf32>
    %c0_8 = arith.constant 0 : index
    %c0_9 = arith.constant 0 : index
    %14 = vector.load %arg5[%c0_8, %c0_9] : memref<4x1xf32, #tpu.memory_space<vmem>>, vector<4x1xf32>
    %15 = arith.addf %13, %14 : vector<4x1xf32>
    %cst_10 = arith.constant 0.000000e+00 : f32
    %16 = vector.broadcast %cst_10 : f32 to vector<4x1xf32>
    %17 = arith.maximumf %15, %16 : vector<4x1xf32>
    %c0_11 = arith.constant 0 : index
    %c0_12 = arith.constant 0 : index
    %18 = vector.load %arg6[%c0_11, %c0_12] : memref<4x4xf32, #tpu.memory_space<vmem>>, vector<4x4xf32>
    %cst_13 = arith.constant dense<0.000000e+00> : vector<4x1xf32>
    %19 = tpu.matmul %18, %17, %cst_13 {dimension_numbers = #tpu.dot_dimension_numbers<[1], [0], [0], [1], [0, 0, 1, 1], [], []>} : vector<4x4xf32>, vector<4x1xf32>, vector<4x1xf32> -> vector<4x1xf32>
    %c0_14 = arith.constant 0 : index
    %c0_15 = arith.constant 0 : index
    %20 = vector.load %arg7[%c0_14, %c0_15] : memref<4x1xf32, #tpu.memory_space<vmem>>, vector<4x1xf32>
    %21 = arith.addf %19, %20 : vector<4x1xf32>
    %22 = arith.negf %21 : vector<4x1xf32>
    %23 = math.exp %22 : vector<4x1xf32>
    %cst_16 = arith.constant 1.000000e+00 : f32
    %24 = vector.broadcast %cst_16 : f32 to vector<4x1xf32>
    %25 = arith.addf %24, %23 : vector<4x1xf32>
    %26 = arith.divf %24, %25 : vector<4x1xf32>
    %c0_17 = arith.constant 0 : index
    %c0_18 = arith.constant 0 : index
    %27 = vector.load %arg8[%c0_17, %c0_18] : memref<4x4xf32, #tpu.memory_space<vmem>>, vector<4x4xf32>
    %cst_19 = arith.constant dense<0.000000e+00> : vector<4x1xf32>
    %28 = tpu.matmul %27, %5, %cst_19 {dimension_numbers = #tpu.dot_dimension_numbers<[1], [0], [0], [1], [0, 0, 1, 1], [], []>} : vector<4x4xf32>, vector<4x1xf32>, vector<4x1xf32> -> vector<4x1xf32>
    %c0_20 = arith.constant 0 : index
    %c0_21 = arith.constant 0 : index
    %29 = vector.load %arg9[%c0_20, %c0_21] : memref<4x1xf32, #tpu.memory_space<vmem>>, vector<4x1xf32>
    %30 = vector.broadcast %7 : f32 to vector<4x1xf32>
    %31 = arith.mulf %30, %29 : vector<4x1xf32>
    %32 = arith.addf %28, %31 : vector<4x1xf32>
    %c0_22 = arith.constant 0 : index
    %c0_23 = arith.constant 0 : index
    %33 = vector.load %arg10[%c0_22, %c0_23] : memref<4x1xf32, #tpu.memory_space<vmem>>, vector<4x1xf32>
    %34 = arith.addf %32, %33 : vector<4x1xf32>
    %cst_24 = arith.constant 0.000000e+00 : f32
    %35 = vector.broadcast %cst_24 : f32 to vector<4x1xf32>
    %36 = arith.maximumf %34, %35 : vector<4x1xf32>
    %c0_25 = arith.constant 0 : index
    %c0_26 = arith.constant 0 : index
    %37 = vector.load %arg11[%c0_25, %c0_26] : memref<4x4xf32, #tpu.memory_space<vmem>>, vector<4x4xf32>
    %cst_27 = arith.constant dense<0.000000e+00> : vector<4x1xf32>
    %38 = tpu.matmul %37, %36, %cst_27 {dimension_numbers = #tpu.dot_dimension_numbers<[1], [0], [0], [1], [0, 0, 1, 1], [], []>} : vector<4x4xf32>, vector<4x1xf32>, vector<4x1xf32> -> vector<4x1xf32>
    %c0_28 = arith.constant 0 : index
    %c0_29 = arith.constant 0 : index
    %39 = vector.load %arg12[%c0_28, %c0_29] : memref<4x1xf32, #tpu.memory_space<vmem>>, vector<4x1xf32>
    %40 = arith.addf %38, %39 : vector<4x1xf32>
    %41 = vector.broadcast %26 : vector<4x1xf32> to vector<4x256xf32>
    %42 = arith.mulf %1, %41 : vector<4x256xf32>
    %43 = vector.broadcast %40 : vector<4x1xf32> to vector<4x256xf32>
    %44 = arith.addf %42, %43 : vector<4x256xf32>
    %c0_30 = arith.constant 0 : index
    %c0_31 = arith.constant 0 : index
    %c0_32 = arith.constant 0 : index
    %45 = vector.load %arg13[%c0_30, %c0_31, %c0_32] : memref<1x4x256xf32, #tpu.memory_space<vmem>>, vector<1x4x256xf32>
    %46 = vector.shape_cast %45 : vector<1x4x256xf32> to vector<4x256xf32>
    %47 = vector.shape_cast %44 : vector<4x256xf32> to vector<1x4x256xf32>
    tpu.vector_store %arg13[%c0_30, %c0_31, %c0_32], %47 {strides = array<i32>} : memref<1x4x256xf32, #tpu.memory_space<vmem>>, vector<1x4x256xf32>,
    return
  }
  func.func @transform_0(%arg0: i32) -> (i32, i32, i32) {
    %c0_i32 = arith.constant 0 : i32
    %c0_i32_0 = arith.constant 0 : i32
    %c0_i32_1 = arith.constant 0 : i32
    return %arg0, %c0_i32, %c0_i32_0 : i32, i32, i32
  }
  func.func @transform_1(%arg0: i32) -> i32 {
    %c0_i32 = arith.constant 0 : i32
    %c0_i32_0 = arith.constant 0 : i32
    return %c0_i32 : i32
  }
  func.func @transform_2(%arg0: i32) -> (i32, i32) {
    %c0_i32 = arith.constant 0 : i32
    %c0_i32_0 = arith.constant 0 : i32
    %c0_i32_1 = arith.constant 0 : i32
    return %c0_i32, %c0_i32_0 : i32, i32
  }
  func.func @transform_3(%arg0: i32) -> (i32, i32) {
    %c0_i32 = arith.constant 0 : i32
    %c0_i32_0 = arith.constant 0 : i32
    %c0_i32_1 = arith.constant 0 : i32
    return %c0_i32, %c0_i32_0 : i32, i32
  }
  func.func @transform_4(%arg0: i32) -> (i32, i32) {
    %c0_i32 = arith.constant 0 : i32
    %c0_i32_0 = arith.constant 0 : i32
    %c0_i32_1 = arith.constant 0 : i32
    return %c0_i32, %c0_i32_0 : i32, i32
  }
  func.func @transform_5(%arg0: i32) -> (i32, i32) {
    %c0_i32 = arith.constant 0 : i32
    %c0_i32_0 = arith.constant 0 : i32
    %c0_i32_1 = arith.constant 0 : i32
    return %c0_i32, %c0_i32_0 : i32, i32
  }
  func.func @transform_6(%arg0: i32) -> (i32, i32) {
    %c0_i32 = arith.constant 0 : i32
    %c0_i32_0 = arith.constant 0 : i32
    %c0_i32_1 = arith.constant 0 : i32
    return %c0_i32, %c0_i32_0 : i32, i32
  }
  func.func @transform_7(%arg0: i32) -> (i32, i32) {
    %c0_i32 = arith.constant 0 : i32
    %c0_i32_0 = arith.constant 0 : i32
    %c0_i32_1 = arith.constant 0 : i32
    return %c0_i32, %c0_i32_0 : i32, i32
  }
  func.func @transform_8(%arg0: i32) -> (i32, i32) {
    %c0_i32 = arith.constant 0 : i32
    %c0_i32_0 = arith.constant 0 : i32
    %c0_i32_1 = arith.constant 0 : i32
    return %c0_i32, %c0_i32_0 : i32, i32
  }
  func.func @transform_9(%arg0: i32) -> (i32, i32) {
    %c0_i32 = arith.constant 0 : i32
    %c0_i32_0 = arith.constant 0 : i32
    %c0_i32_1 = arith.constant 0 : i32
    return %c0_i32, %c0_i32_0 : i32, i32
  }
  func.func @transform_10(%arg0: i32) -> (i32, i32) {
    %c0_i32 = arith.constant 0 : i32
    %c0_i32_0 = arith.constant 0 : i32
    %c0_i32_1 = arith.constant 0 : i32
    return %c0_i32, %c0_i32_0 : i32, i32
  }
  func.func @transform_11(%arg0: i32) -> (i32, i32) {
    %c0_i32 = arith.constant 0 : i32
    %c0_i32_0 = arith.constant 0 : i32
    %c0_i32_1 = arith.constant 0 : i32
    return %c0_i32, %c0_i32_0 : i32, i32
  }
  func.func @transform_12(%arg0: i32) -> (i32, i32, i32) {
    %c0_i32 = arith.constant 0 : i32
    %c0_i32_0 = arith.constant 0 : i32
    %c0_i32_1 = arith.constant 0 : i32
    return %arg0, %c0_i32, %c0_i32_0 : i32, i32, i32
  }
}

</mosaic_0001>

<llo_original>
// kernel: tpu_custom_call.1
$region0: #{tpu_custom_call.1}
  #allocation0 [shape = 'u32[]', space=smem, size = 0x4, offset = 0x4, fixed_abs, tag = 'smem constant byte address 0x4 - core index']
  #allocation1 [shape = 'u32[144,128]{1,0:T(1,128)}', space=vmem, size = 0x12000, scoped, tag = 'internal scratch']
  %s0 = inlined_call_operand.vmem [shape: f32[2,4,256], index: 0, kind: input, shape index: {}]
  %s1 = inlined_call_operand.hbm [shape: f32[2], index: 1, kind: input, shape index: {}]
  %s2 = inlined_call_operand.vmem [shape: f32[4,4], index: 2, kind: input, shape index: {}]
  %s3 = inlined_call_operand.vmem [shape: f32[4,1], index: 3, kind: input, shape index: {}]
  %s4 = inlined_call_operand.vmem [shape: f32[4,1], index: 4, kind: input, shape index: {}]
  %s5 = inlined_call_operand.vmem [shape: f32[4,4], index: 5, kind: input, shape index: {}]
  %s6 = inlined_call_operand.vmem [shape: f32[4,1], index: 6, kind: input, shape index: {}]
  %s7 = inlined_call_operand.vmem [shape: f32[4,4], index: 7, kind: input, shape index: {}]
  %s8 = inlined_call_operand.vmem [shape: f32[4,1], index: 8, kind: input, shape index: {}]
  %s9 = inlined_call_operand.vmem [shape: f32[4,1], index: 9, kind: input, shape index: {}]
  %s10 = inlined_call_operand.vmem [shape: f32[4,4], index: 10, kind: input, shape index: {}]
  %s11 = inlined_call_operand.vmem [shape: f32[4,1], index: 11, kind: input, shape index: {}]
  %s12 = inlined_call_operand.hbm [shape: f32[2,4,256], index: 12, kind: output, shape index: {}]
  %s13 = sld [smem:[#allocation0]]
  $region85: #{tpu_custom_call.1} parent=0
    _
  %s15 = ssub.s32 1, %s13
  %s16 = scalar_select 0, %s15, %s13
  $region1: #{tpu_custom_call.1} parent=0
    #allocation2 [shape = 'u8[512]{0}', space=smem, size = 0x200, scoped, tag = 'input window, operand 1, single buffered']
    #allocation3 [shape = 's32[2]{0}', space=sflag, size = 0x8, scoped, tag = 'scoped memory for tpu_custom_call.1']
    #allocation4 [shape = 's32[2]{0}', space=sflag, size = 0x8, scoped, tag = 'scoped memory for tpu_custom_call.1']
    #allocation5 [shape = 'u8[8192]{0}', space=vmem, size = 0x2000, scoped, tag = 'output window, operand 0']
    %17 = vsyncpa [#allocation4], 0
    %18 = vsyncpa [#allocation3], 0
    %s19 = scalar_lea.sflag [#allocation3], 1
    %20 = vsyncpa %s19, 0
    loop: start=0, step=1, limit=4
    $region2: #{tpu_custom_call.1} parent=1 // loop_pre_header
      _
    $region3: #{tpu_custom_call.1} parent=1 // loop_header
      %s22 = sphi 0, %s26
      %p23 = scmp.ge.s32.totalorder %s22, 4
      %s32 = sphi 0, %s34
      %s35 = sphi 0, %s32
      %s36 = sphi 0, %s35
      %s52 = sphi 0, %s36
      %s56 = sphi 0, %s56
      %s58 = sphi 0, %s56
      %s59 = sphi 0, %s58
      %s73 = sphi 0, %s59
      %s77 = sphi 0, %s77
      %s79 = sphi 0, %s77
      %s80 = sphi 0, %s79
      %s94 = sphi 0, %s80
      %s98 = sphi 0, %s98
      %s100 = sphi 0, %s98
      %s101 = sphi 0, %s100
      %s115 = sphi 0, %s101
      %s119 = sphi 0, %s119
      %s121 = sphi 0, %s119
      %s122 = sphi 0, %s121
      %s136 = sphi 0, %s122
      %s140 = sphi 0, %s140
      %s142 = sphi 0, %s140
      %s143 = sphi 0, %s142
      %s157 = sphi 0, %s143
      %s161 = sphi 0, %s161
      %s163 = sphi 0, %s161
      %s164 = sphi 0, %s163
      %s178 = sphi 0, %s164
      %s182 = sphi 0, %s182
      %s184 = sphi 0, %s182
      %s185 = sphi 0, %s184
      %s199 = sphi 0, %s185
      %s203 = sphi 0, %s203
      %s205 = sphi 0, %s203
      %s206 = sphi 0, %s205
      %s220 = sphi 0, %s206
      %s224 = sphi 0, %s224
      %s226 = sphi 0, %s224
      %s227 = sphi 0, %s226
      %s241 = sphi 0, %s227
      %s245 = sphi 0, %s245
      %s247 = sphi 0, %s245
      %s248 = sphi 0, %s247
      %s262 = sphi 0, %s248
      %s266 = sphi 0, %s266
      %s268 = sphi 0, %s266
      %s269 = sphi 0, %s268
      %s283 = sphi 0, %s269
      %s289 = sphi 0, %s291
      %s292 = sphi 0, %s289
      %s293 = sphi 0, %s292
      %s309 = sphi 0, %s293
    $region4: #{tpu_custom_call.1} parent=1 // loop_header_branch
      %25 = sbr.rel (%p23) target = $region8
    $region5: #{tpu_custom_call.1} parent=1 // loop_body
      %s27 = ssub.s32 %s22, 1
      %s28 = ssub.s32 %s22, 2
      %s29 = sadd.s32 %s22, 1
      %s30 = ssub.s32 %s22, %s29
      %p31 = scmp.eq.s32.totalorder %s30, 0
      %s33 = sadd.s32 %s32, 1
      %s34 = scalar_select %p31, %s32, %s33
      %p37 = pneg %p31
      %p38 = scmp.eq.s32.totalorder %s22, 1
      %p39 = por %p37, %p38
      %p40 = scmp.ne.s32.totalorder %s32, %s35
      %p41 = scmp.eq.s32.totalorder %s22, 0
      %p42 = por %p40, %p41
      %p43 = scmp.ne.s32.totalorder %s32, %s35
      %p44 = scmp.eq.s32.totalorder %s27, 1
      %p45 = por %p43, %p44
      %p46 = scmp.ne.s32.totalorder %s35, %s36
      %p47 = scmp.eq.s32.totalorder %s27, 0
      %p48 = por %p46, %p47
      %p49 = scmp.ne.s32.totalorder %s35, %s36
      %p50 = scmp.eq.s32.totalorder %s28, 1
      %p51 = por %p49, %p50
      %p53 = scmp.ne.s32.totalorder %s36, %s52
      %p54 = scmp.eq.s32.totalorder %s28, 0
      %p55 = por %p53, %p54
      %s57 = sadd.s32 %s56, 1
      %p60 = scmp.eq.s32.totalorder %s22, 1
      %p61 = scmp.ne.s32.totalorder %s56, %s58
      %p62 = scmp.eq.s32.totalorder %s22, 0
      %p63 = por %p61, %p62
      %p64 = scmp.ne.s32.totalorder %s56, %s58
      %p65 = scmp.eq.s32.totalorder %s27, 1
      %p66 = por %p64, %p65
      %p67 = scmp.ne.s32.totalorder %s58, %s59
      %p68 = scmp.eq.s32.totalorder %s27, 0
      %p69 = por %p67, %p68
      %p70 = scmp.ne.s32.totalorder %s58, %s59
      %p71 = scmp.eq.s32.totalorder %s28, 1
      %p72 = por %p70, %p71
      %p74 = scmp.ne.s32.totalorder %s59, %s73
      %p75 = scmp.eq.s32.totalorder %s28, 0
      %p76 = por %p74, %p75
      %s78 = sadd.s32 %s77, 1
      %p81 = scmp.eq.s32.totalorder %s22, 1
      %p82 = scmp.ne.s32.totalorder %s77, %s79
      %p83 = scmp.eq.s32.totalorder %s22, 0
      %p84 = por %p82, %p83
      %p85 = scmp.ne.s32.totalorder %s77, %s79
      %p86 = scmp.eq.s32.totalorder %s27, 1
      %p87 = por %p85, %p86
      %p88 = scmp.ne.s32.totalorder %s79, %s80
      %p89 = scmp.eq.s32.totalorder %s27, 0
      %p90 = por %p88, %p89
      %p91 = scmp.ne.s32.totalorder %s79, %s80
      %p92 = scmp.eq.s32.totalorder %s28, 1
      %p93 = por %p91, %p92
      %p95 = scmp.ne.s32.totalorder %s80, %s94
      %p96 = scmp.eq.s32.totalorder %s28, 0
      %p97 = por %p95, %p96
      %s99 = sadd.s32 %s98, 1
      %p102 = scmp.eq.s32.totalorder %s22, 1
      %p103 = scmp.ne.s32.totalorder %s98, %s100
      %p104 = scmp.eq.s32.totalorder %s22, 0
      %p105 = por %p103, %p104
      %p106 = scmp.ne.s32.totalorder %s98, %s100
      %p107 = scmp.eq.s32.totalorder %s27, 1
      %p108 = por %p106, %p107
      %p109 = scmp.ne.s32.totalorder %s100, %s101
      %p110 = scmp.eq.s32.totalorder %s27, 0
      %p111 = por %p109, %p110
      %p112 = scmp.ne.s32.totalorder %s100, %s101
      %p113 = scmp.eq.s32.totalorder %s28, 1
      %p114 = por %p112, %p113
      %p116 = scmp.ne.s32.totalorder %s101, %s115
      %p117 = scmp.eq.s32.totalorder %s28, 0
      %p118 = por %p116, %p117
      %s120 = sadd.s32 %s119, 1
      %p123 = scmp.eq.s32.totalorder %s22, 1
      %p124 = scmp.ne.s32.totalorder %s119, %s121
      %p125 = scmp.eq.s32.totalorder %s22, 0
      %p126 = por %p124, %p125
      %p127 = scmp.ne.s32.totalorder %s119, %s121
      %p128 = scmp.eq.s32.totalorder %s27, 1
      %p129 = por %p127, %p128
      %p130 = scmp.ne.s32.totalorder %s121, %s122
      %p131 = scmp.eq.s32.totalorder %s27, 0
      %p132 = por %p130, %p131
      %p133 = scmp.ne.s32.totalorder %s121, %s122
      %p134 = scmp.eq.s32.totalorder %s28, 1
      %p135 = por %p133, %p134
      %p137 = scmp.ne.s32.totalorder %s122, %s136
      %p138 = scmp.eq.s32.totalorder %s28, 0
      %p139 = por %p137, %p138
      %s141 = sadd.s32 %s140, 1
      %p144 = scmp.eq.s32.totalorder %s22, 1
      %p145 = scmp.ne.s32.totalorder %s140, %s142
      %p146 = scmp.eq.s32.totalorder %s22, 0
      %p147 = por %p145, %p146
      %p148 = scmp.ne.s32.totalorder %s140, %s142
      %p149 = scmp.eq.s32.totalorder %s27, 1
      %p150 = por %p148, %p149
      %p151 = scmp.ne.s32.totalorder %s142, %s143
      %p152 = scmp.eq.s32.totalorder %s27, 0
      %p153 = por %p151, %p152
      %p154 = scmp.ne.s32.totalorder %s142, %s143
      %p155 = scmp.eq.s32.totalorder %s28, 1
      %p156 = por %p154, %p155
      %p158 = scmp.ne.s32.totalorder %s143, %s157
      %p159 = scmp.eq.s32.totalorder %s28, 0
      %p160 = por %p158, %p159
      %s162 = sadd.s32 %s161, 1
      %p165 = scmp.eq.s32.totalorder %s22, 1
      %p166 = scmp.ne.s32.totalorder %s161, %s163
      %p167 = scmp.eq.s32.totalorder %s22, 0
      %p168 = por %p166, %p167
      %p169 = scmp.ne.s32.totalorder %s161, %s163
      %p170 = scmp.eq.s32.totalorder %s27, 1
      %p171 = por %p169, %p170
      %p172 = scmp.ne.s32.totalorder %s163, %s164
      %p173 = scmp.eq.s32.totalorder %s27, 0
      %p174 = por %p172, %p173
      %p175 = scmp.ne.s32.totalorder %s163, %s164
      %p176 = scmp.eq.s32.totalorder %s28, 1
      %p177 = por %p175, %p176
      %p179 = scmp.ne.s32.totalorder %s164, %s178
      %p180 = scmp.eq.s32.totalorder %s28, 0
      %p181 = por %p179, %p180
      %s183 = sadd.s32 %s182, 1
      %p186 = scmp.eq.s32.totalorder %s22, 1
      %p187 = scmp.ne.s32.totalorder %s182, %s184
      %p188 = scmp.eq.s32.totalorder %s22, 0
      %p189 = por %p187, %p188
      %p190 = scmp.ne.s32.totalorder %s182, %s184
      %p191 = scmp.eq.s32.totalorder %s27, 1
      %p192 = por %p190, %p191
      %p193 = scmp.ne.s32.totalorder %s184, %s185
      %p194 = scmp.eq.s32.totalorder %s27, 0
      %p195 = por %p193, %p194
      %p196 = scmp.ne.s32.totalorder %s184, %s185
      %p197 = scmp.eq.s32.totalorder %s28, 1
      %p198 = por %p196, %p197
      %p200 = scmp.ne.s32.totalorder %s185, %s199
      %p201 = scmp.eq.s32.totalorder %s28, 0
      %p202 = por %p200, %p201
      %s204 = sadd.s32 %s203, 1
      %p207 = scmp.eq.s32.totalorder %s22, 1
      %p208 = scmp.ne.s32.totalorder %s203, %s205
      %p209 = scmp.eq.s32.totalorder %s22, 0
      %p210 = por %p208, %p209
      %p211 = scmp.ne.s32.totalorder %s203, %s205
      %p212 = scmp.eq.s32.totalorder %s27, 1
      %p213 = por %p211, %p212
      %p214 = scmp.ne.s32.totalorder %s205, %s206
      %p215 = scmp.eq.s32.totalorder %s27, 0
      %p216 = por %p214, %p215
      %p217 = scmp.ne.s32.totalorder %s205, %s206
      %p218 = scmp.eq.s32.totalorder %s28, 1
      %p219 = por %p217, %p218
      %p221 = scmp.ne.s32.totalorder %s206, %s220
      %p222 = scmp.eq.s32.totalorder %s28, 0
      %p223 = por %p221, %p222
      %s225 = sadd.s32 %s224, 1
      %p228 = scmp.eq.s32.totalorder %s22, 1
      %p229 = scmp.ne.s32.totalorder %s224, %s226
      %p230 = scmp.eq.s32.totalorder %s22, 0
      %p231 = por %p229, %p230
      %p232 = scmp.ne.s32.totalorder %s224, %s226
      %p233 = scmp.eq.s32.totalorder %s27, 1
      %p234 = por %p232, %p233
      %p235 = scmp.ne.s32.totalorder %s226, %s227
      %p236 = scmp.eq.s32.totalorder %s27, 0
      %p237 = por %p235, %p236
      %p238 = scmp.ne.s32.totalorder %s226, %s227
      %p239 = scmp.eq.s32.totalorder %s28, 1
      %p240 = por %p238, %p239
      %p242 = scmp.ne.s32.totalorder %s227, %s241
      %p243 = scmp.eq.s32.totalorder %s28, 0
      %p244 = por %p242, %p243
      %s246 = sadd.s32 %s245, 1
      %p249 = scmp.eq.s32.totalorder %s22, 1
      %p250 = scmp.ne.s32.totalorder %s245, %s247
      %p251 = scmp.eq.s32.totalorder %s22, 0
      %p252 = por %p250, %p251
      %p253 = scmp.ne.s32.totalorder %s245, %s247
      %p254 = scmp.eq.s32.totalorder %s27, 1
      %p255 = por %p253, %p254
      %p256 = scmp.ne.s32.totalorder %s247, %s248
      %p257 = scmp.eq.s32.totalorder %s27, 0
      %p258 = por %p256, %p257
      %p259 = scmp.ne.s32.totalorder %s247, %s248
      %p260 = scmp.eq.s32.totalorder %s28, 1
      %p261 = por %p259, %p260
      %p263 = scmp.ne.s32.totalorder %s248, %s262
      %p264 = scmp.eq.s32.totalorder %s28, 0
      %p265 = por %p263, %p264
      %s267 = sadd.s32 %s266, 1
      %p270 = scmp.eq.s32.totalorder %s22, 1
      %p271 = scmp.ne.s32.totalorder %s266, %s268
      %p272 = scmp.eq.s32.totalorder %s22, 0
      %p273 = por %p271, %p272
      %p274 = scmp.ne.s32.totalorder %s266, %s268
      %p275 = scmp.eq.s32.totalorder %s27, 1
      %p276 = por %p274, %p275
      %p277 = scmp.ne.s32.totalorder %s268, %s269
      %p278 = scmp.eq.s32.totalorder %s27, 0
      %p279 = por %p277, %p278
      %p280 = scmp.ne.s32.totalorder %s268, %s269
      %p281 = scmp.eq.s32.totalorder %s28, 1
      %p282 = por %p280, %p281
      %p284 = scmp.ne.s32.totalorder %s269, %s283
      %p285 = scmp.eq.s32.totalorder %s28, 0
      %p286 = por %p284, %p285
      %s287 = ssub.s32 %s22, %s29
      %p288 = scmp.eq.s32.totalorder %s287, 0
      %s290 = sadd.s32 %s289, 1
      %s291 = scalar_select %p288, %s289, %s290
      %p294 = pneg %p288
      %p295 = scmp.eq.s32.totalorder %s22, 1
      %p296 = por %p294, %p295
      %p297 = scmp.ne.s32.totalorder %s289, %s292
      %p298 = scmp.eq.s32.totalorder %s22, 0
      %p299 = por %p297, %p298
      %p300 = scmp.ne.s32.totalorder %s289, %s292
      %p301 = scmp.eq.s32.totalorder %s27, 1
      %p302 = por %p300, %p301
      %p303 = scmp.ne.s32.totalorder %s292, %s293
      %p304 = scmp.eq.s32.totalorder %s27, 0
      %p305 = por %p303, %p304
      %p306 = scmp.ne.s32.totalorder %s292, %s293
      %p307 = scmp.eq.s32.totalorder %s28, 1
      %p308 = por %p306, %p307
      %p310 = scmp.ne.s32.totalorder %s293, %s309
      %p311 = scmp.eq.s32.totalorder %s28, 0
      %p312 = por %p310, %p311
      %p313 = scmp.le.s32.totalorder 1, %s22
      %p314 = scmp.lt.s32.totalorder %s22, 3
      %p315 = pnand %p313, %p314
      %p316 = pneg %p315
      // Predicated region
      $region9: #{tpu_custom_call.1} parent=5 // pred_check
        _
      $region10: #{tpu_custom_call.1} parent=5 // pred_check_branch
        %318 = sbr.rel (%p315) target = $region12
      $region11: #{tpu_custom_call.1} parent=5 // pred_region
        %s319 = ssub.s32 %s22, 1
        // Predicated region
        $region13: #{tpu_custom_call.1} parent=11 // pred_check
          %p320 = pneg %p69
        $region14: #{tpu_custom_call.1} parent=11 // pred_check_branch
          %322 = sbr.rel (%p320) target = $region16
        $region15: #{tpu_custom_call.1} parent=11 // pred_region
          %s324 = ssub.s32 16, 16
          %325 = vsyncadd [#allocation4], %s324
          %328 = dma.hbm_to_smem %s1, 16, [#allocation2], [#allocation4]
        $region16: #{tpu_custom_call.1} parent=11 // pred_fallthru
          _
        // Predicated region
        $region17: #{tpu_custom_call.1} parent=11 // pred_check
          %p329 = pneg %p90
        $region18: #{tpu_custom_call.1} parent=11 // pred_check_branch
          %331 = sbr.rel (%p329) target = $region20
        $region19: #{tpu_custom_call.1} parent=11 // pred_region
          _
        $region20: #{tpu_custom_call.1} parent=11 // pred_fallthru
          _
        // Predicated region
        $region21: #{tpu_custom_call.1} parent=11 // pred_check
          %p332 = pneg %p111
        $region22: #{tpu_custom_call.1} parent=11 // pred_check_branch
          %334 = sbr.rel (%p332) target = $region24
        $region23: #{tpu_custom_call.1} parent=11 // pred_region
          _
        $region24: #{tpu_custom_call.1} parent=11 // pred_fallthru
          _
        // Predicated region
        $region25: #{tpu_custom_call.1} parent=11 // pred_check
          %p335 = pneg %p132
        $region26: #{tpu_custom_call.1} parent=11 // pred_check_branch
          %337 = sbr.rel (%p335) target = $region28
        $region27: #{tpu_custom_call.1} parent=11 // pred_region
          _
        $region28: #{tpu_custom_call.1} parent=11 // pred_fallthru
          _
        // Predicated region
        $region29: #{tpu_custom_call.1} parent=11 // pred_check
          %p338 = pneg %p153
        $region30: #{tpu_custom_call.1} parent=11 // pred_check_branch
          %340 = sbr.rel (%p338) target = $region32
        $region31: #{tpu_custom_call.1} parent=11 // pred_region
          _
        $region32: #{tpu_custom_call.1} parent=11 // pred_fallthru
          _
        // Predicated region
        $region33: #{tpu_custom_call.1} parent=11 // pred_check
          %p341 = pneg %p174
        $region34: #{tpu_custom_call.1} parent=11 // pred_check_branch
          %343 = sbr.rel (%p341) target = $region36
        $region35: #{tpu_custom_call.1} parent=11 // pred_region
          _
        $region36: #{tpu_custom_call.1} parent=11 // pred_fallthru
          _
        // Predicated region
        $region37: #{tpu_custom_call.1} parent=11 // pred_check
          %p344 = pneg %p195
        $region38: #{tpu_custom_call.1} parent=11 // pred_check_branch
          %346 = sbr.rel (%p344) target = $region40
        $region39: #{tpu_custom_call.1} parent=11 // pred_region
          _
        $region40: #{tpu_custom_call.1} parent=11 // pred_fallthru
          _
        // Predicated region
        $region41: #{tpu_custom_call.1} parent=11 // pred_check
          %p347 = pneg %p216
        $region42: #{tpu_custom_call.1} parent=11 // pred_check_branch
          %349 = sbr.rel (%p347) target = $region44
        $region43: #{tpu_custom_call.1} parent=11 // pred_region
          _
        $region44: #{tpu_custom_call.1} parent=11 // pred_fallthru
          _
        // Predicated region
        $region45: #{tpu_custom_call.1} parent=11 // pred_check
          %p350 = pneg %p237
        $region46: #{tpu_custom_call.1} parent=11 // pred_check_branch
          %352 = sbr.rel (%p350) target = $region48
        $region47: #{tpu_custom_call.1} parent=11 // pred_region
          _
        $region48: #{tpu_custom_call.1} parent=11 // pred_fallthru
          _
        // Predicated region
        $region49: #{tpu_custom_call.1} parent=11 // pred_check
          %p353 = pneg %p258
        $region50: #{tpu_custom_call.1} parent=11 // pred_check_branch
          %355 = sbr.rel (%p353) target = $region52
        $region51: #{tpu_custom_call.1} parent=11 // pred_region
          _
        $region52: #{tpu_custom_call.1} parent=11 // pred_fallthru
          _
        // Predicated region
        $region53: #{tpu_custom_call.1} parent=11 // pred_check
          %p356 = pneg %p279
        $region54: #{tpu_custom_call.1} parent=11 // pred_check_branch
          %358 = sbr.rel (%p356) target = $region56
        $region55: #{tpu_custom_call.1} parent=11 // pred_region
          _
        $region56: #{tpu_custom_call.1} parent=11 // pred_fallthru
          _
      $region12: #{tpu_custom_call.1} parent=5 // pred_fallthru
        _
      %p359 = scmp.lt.s32.totalorder %s22, 2
      // Predicated region
      $region57: #{tpu_custom_call.1} parent=5 // pred_check
        %p360 = pneg %p359
      $region58: #{tpu_custom_call.1} parent=5 // pred_check_branch
        %362 = sbr.rel (%p360) target = $region60
      $region59: #{tpu_custom_call.1} parent=5 // pred_region
        // Predicated region
        $region61: #{tpu_custom_call.1} parent=59 // pred_check
          %p363 = pneg %p42
        $region62: #{tpu_custom_call.1} parent=59 // pred_check_branch
          %365 = sbr.rel (%p363) target = $region64
        $region63: #{tpu_custom_call.1} parent=59 // pred_region
          %p366 = scmp.lt.s32.totalorder %s22, 1
          %s367 = scalar_select %p366, %s22, 1
          %s368 = smul.addr %s367, 2
          %s369 = smul.addr %s368, 4
          %s370 = scalar_lea.vmem %s0, %s369
        $region64: #{tpu_custom_call.1} parent=59 // pred_fallthru
          _
      $region60: #{tpu_custom_call.1} parent=5 // pred_fallthru
        _
      %p371 = scmp.le.s32.totalorder 1, %s22
      %p372 = scmp.lt.s32.totalorder %s22, 3
      %p373 = pnand %p371, %p372
      %p374 = pneg %p373
      // Predicated region
      $region65: #{tpu_custom_call.1} parent=5 // pred_check
        _
      $region66: #{tpu_custom_call.1} parent=5 // pred_check_branch
        %376 = sbr.rel (%p373) target = $region68
      $region67: #{tpu_custom_call.1} parent=5 // pred_region
        %s377 = ssub.s32 %s22, 1
        // Predicated region
        $region69: #{tpu_custom_call.1} parent=67 // pred_check
          %p378 = pneg %p69
        $region70: #{tpu_custom_call.1} parent=67 // pred_check_branch
          %380 = sbr.rel (%p378) target = $region72
        $region71: #{tpu_custom_call.1} parent=67 // pred_region
          %381 = dma.done [#allocation4], 16
        $region72: #{tpu_custom_call.1} parent=67 // pred_fallthru
          _
        %382 = sfence
        %p383 = scmp.lt.s32.totalorder %s27, 1
        %s384 = scalar_select %p383, %s27, 1
        %s385 = smul.addr %s384, 2
        %s386 = smul.addr %s385, 4
        %s387 = scalar_lea.vmem %s0, %s386
        %p388 = pneg %p48
        %p389 = pneg %p45
        %p390 = pneg %p69
        %p391 = pneg %p66
        %p392 = pneg %p90
        %p393 = pneg %p87
        %p394 = pneg %p111
        %p395 = pneg %p108
        %p396 = pneg %p132
        %p397 = pneg %p129
        %p398 = pneg %p153
        %p399 = pneg %p150
        %p400 = pneg %p174
        %p401 = pneg %p171
        %p402 = pneg %p195
        %p403 = pneg %p192
        %p404 = pneg %p216
        %p405 = pneg %p213
        %p406 = pneg %p237
        %p407 = pneg %p234
        %p408 = pneg %p258
        %p409 = pneg %p255
        %p410 = pneg %p279
        %p411 = pneg %p276
        %p412 = pneg %p305
        %p413 = pneg %p302
        %s414 = sand.u32 %s292, 1
        %s415 = scalar_lea.sflag [#allocation3], %s414
        %s416 = sand.u32 %s292, 1
        %s417 = smul.addr %s416, 8
        %s418 = scalar_lea.vmem [#allocation5], %s417
        %p419 = scmp.lt.s32.totalorder %s27, 1
        %s420 = scalar_select %p419, %s27, 1
        %s421 = smul.addr %s420, 2
        %s422 = smul.addr %s421, 4
        %s423 = scalar_lea.vmem %s0, %s422
        %v424 = vld [vmem:[%s423] sm:$0xff]
        %v426 = vcombine.high %v424, %v424
        %vm428 = vcmask 1043456
        %v429 = vsel %vm428, %v424, 0.0
        %v430 = vsel %vm428, %v426, 0.0
        %v431 = vadd.f32 %v429, %v430
        %432 = vadd.xlane.f32.xlu0 %v431
        %v433 = vpop.xlane.xlu0 %432
        %v434 = vmul.f32 %v433, 0.00390625
        %s435 = sld [smem:[#allocation2 + %s27]]
        %v436 = vld [vmem:[%s2] sm:$0xf]
        %v437 = vld [vmem:[%s3] sm:$0xf]
        %v438 = vstv %s435
        %v439 = vmul.f32 %v438, %v437
        %vm440 = vcmask 31744
        %v442 = vsel %vm440, %v436, 0
        %v445 = vsel %vm428, %v434, 0
        %447 = vmatprep.subr.mxu0 0.0
        %448 = vmatpush1.msra.mxu0 0.0
        %449 = vmatprep.subr.mxu0 0.0
        %450 = vmatpush1.msra.mxu0 0.0
        %451 = vmatprep.subr.mxu0 0.0
        %452 = vmatpush1.msra.mxu0 0.0
        %453 = vmatprep.subr.mxu0 0.0
        %454 = vmatpush1.msra.mxu0 0.0
        %455 = vmatprep.subr.mxu0 0.0
        %456 = vmatpush1.msra.mxu0 0.0
        %457 = vmatprep.subr.mxu0 0.0
        %458 = vmatpush1.msra.mxu0 0.0
        %459 = vmatprep.subr.mxu0 0.0
        %460 = vmatpush1.msra.mxu0 0.0
        %461 = vmatprep.subr.mxu0 0.0
        %462 = vmatpush1.msra.mxu0 0.0
        %463 = vmatprep.subr.mxu0 0.0
        %464 = vmatpush1.msra.mxu0 0.0
        %465 = vmatprep.subr.mxu0 0.0
        %466 = vmatpush1.msra.mxu0 0.0
        %467 = vmatprep.subr.mxu0 0.0
        %468 = vmatpush1.msra.mxu0 0.0
        %469 = vmatprep.subr.mxu0 0.0
        %470 = vmatpush1.msra.mxu0 0.0
        %471 = vmatprep.subr.mxu0 0.0
        %472 = vmatpush1.msra.mxu0 0.0
        %473 = vmatprep.subr.mxu0 0.0
        %474 = vmatpush1.msra.mxu0 0.0
        %475 = vmatprep.subr.mxu0 0.0
        %476 = vmatpush1.msra.mxu0 0.0
        %477 = vmatprep.subr.mxu0 0.0
        %478 = vmatpush1.msra.mxu0 %v445
        %479 = vmatprep.subr.mxu0 0.0
        %480 = vmatpush2.msra.mxu0 0.0
        %481 = vmatprep.subr.mxu0 0.0
        %482 = vmatpush2.msra.mxu0 0.0
        %483 = vmatprep.subr.mxu0 0.0
        %484 = vmatpush2.msra.mxu0 0.0
        %485 = vmatprep.subr.mxu0 0.0
        %486 = vmatpush2.msra.mxu0 0.0
        %487 = vmatprep.subr.mxu0 0.0
        %488 = vmatpush2.msra.mxu0 0.0
        %489 = vmatprep.subr.mxu0 0.0
        %490 = vmatpush2.msra.mxu0 0.0
        %491 = vmatprep.subr.mxu0 0.0
        %492 = vmatpush2.msra.mxu0 0.0
        %493 = vmatprep.subr.mxu0 0.0
        %494 = vmatpush2.msra.mxu0 0.0
        %495 = vmatprep.subr.mxu0 0.0
        %496 = vmatpush2.msra.mxu0 0.0
        %497 = vmatprep.subr.mxu0 0.0
        %498 = vmatpush2.msra.mxu0 0.0
        %499 = vmatprep.subr.mxu0 0.0
        %500 = vmatpush2.msra.mxu0 0.0
        %501 = vmatprep.subr.mxu0 0.0
        %502 = vmatpush2.msra.mxu0 0.0
        %503 = vmatprep.subr.mxu0 0.0
        %504 = vmatpush2.msra.mxu0 0.0
        %505 = vmatprep.subr.mxu0 0.0
        %506 = vmatpush2.msra.mxu0 0.0
        %507 = vmatprep.subr.mxu0 0.0
        %508 = vmatpush2.msra.mxu0 0.0
        %509 = vmatprep.subr.mxu0 0.0
        %510 = vmatpush2.msra.mxu0 0.0
        %511 = vmatprep.mubr.f32.mxu0 0.0
        %512 = vmatmul.mubr.f32.gmra.mxu0 %v442
        %v513 = vpop.f32.mrf.mxu0
        %v514 = vadd.f32 %v439, %v513
        %v515 = vpop.f32.mrf.mxu0
        %516 = vdwg.mxu0
        %v517 = vld [vmem:[%s4] sm:$0xf]
        %v518 = vadd.f32 %v514, %v517
        %v519 = vmax.f32 %v518, 0.0
        %v520 = vld [vmem:[%s5] sm:$0xf]
        %v521 = vld [vmem:[%s6] sm:$0xf]
        %v523 = vsel %vm440, %v520, 0
        %v526 = vsel %vm428, %v519, 0
        %528 = vmatprep.subr.mxu0 0.0
        %529 = vmatpush1.msra.mxu0 0.0
        %530 = vmatprep.subr.mxu0 0.0
        %531 = vmatpush1.msra.mxu0 0.0
        %532 = vmatprep.subr.mxu0 0.0
        %533 = vmatpush1.msra.mxu0 0.0
        %534 = vmatprep.subr.mxu0 0.0
        %535 = vmatpush1.msra.mxu0 0.0
        %536 = vmatprep.subr.mxu0 0.0
        %537 = vmatpush1.msra.mxu0 0.0
        %538 = vmatprep.subr.mxu0 0.0
        %539 = vmatpush1.msra.mxu0 0.0
        %540 = vmatprep.subr.mxu0 0.0
        %541 = vmatpush1.msra.mxu0 0.0
        %542 = vmatprep.subr.mxu0 0.0
        %543 = vmatpush1.msra.mxu0 0.0
        %544 = vmatprep.subr.mxu0 0.0
        %545 = vmatpush1.msra.mxu0 0.0
        %546 = vmatprep.subr.mxu0 0.0
        %547 = vmatpush1.msra.mxu0 0.0
        %548 = vmatprep.subr.mxu0 0.0
        %549 = vmatpush1.msra.mxu0 0.0
        %550 = vmatprep.subr.mxu0 0.0
        %551 = vmatpush1.msra.mxu0 0.0
        %552 = vmatprep.subr.mxu0 0.0
        %553 = vmatpush1.msra.mxu0 0.0
        %554 = vmatprep.subr.mxu0 0.0
        %555 = vmatpush1.msra.mxu0 0.0
        %556 = vmatprep.subr.mxu0 0.0
        %557 = vmatpush1.msra.mxu0 0.0
        %558 = vmatprep.subr.mxu0 0.0
        %559 = vmatpush1.msra.mxu0 %v526
        %560 = vmatprep.subr.mxu0 0.0
        %561 = vmatpush2.msra.mxu0 0.0
        %562 = vmatprep.subr.mxu0 0.0
        %563 = vmatpush2.msra.mxu0 0.0
        %564 = vmatprep.subr.mxu0 0.0
        %565 = vmatpush2.msra.mxu0 0.0
        %566 = vmatprep.subr.mxu0 0.0
        %567 = vmatpush2.msra.mxu0 0.0
        %568 = vmatprep.subr.mxu0 0.0
        %569 = vmatpush2.msra.mxu0 0.0
        %570 = vmatprep.subr.mxu0 0.0
        %571 = vmatpush2.msra.mxu0 0.0
        %572 = vmatprep.subr.mxu0 0.0
        %573 = vmatpush2.msra.mxu0 0.0
        %574 = vmatprep.subr.mxu0 0.0
        %575 = vmatpush2.msra.mxu0 0.0
        %576 = vmatprep.subr.mxu0 0.0
        %577 = vmatpush2.msra.mxu0 0.0
        %578 = vmatprep.subr.mxu0 0.0
        %579 = vmatpush2.msra.mxu0 0.0
        %580 = vmatprep.subr.mxu0 0.0
        %581 = vmatpush2.msra.mxu0 0.0
        %582 = vmatprep.subr.mxu0 0.0
        %583 = vmatpush2.msra.mxu0 0.0
        %584 = vmatprep.subr.mxu0 0.0
        %585 = vmatpush2.msra.mxu0 0.0
        %586 = vmatprep.subr.mxu0 0.0
        %587 = vmatpush2.msra.mxu0 0.0
        %588 = vmatprep.subr.mxu0 0.0
        %589 = vmatpush2.msra.mxu0 0.0
        %590 = vmatprep.subr.mxu0 0.0
        %591 = vmatpush2.msra.mxu0 0.0
        %592 = vmatprep.mubr.f32.mxu0 0.0
        %593 = vmatmul.mubr.f32.gmra.mxu0 %v523
        %v594 = vpop.f32.mrf.mxu0
        %v595 = vadd.f32 %v521, %v594
        %v596 = vpop.f32.mrf.mxu0
        %597 = vdwg.mxu0
        %v598 = vxor.u32 %v595, 2147483648
        %v599 = vmul.f32 %v598, 1.442695
        %v600 = vpow.pop %v599
        %v601 = vadd.f32 %v600, 1.0
        %v602 = vrcp.pop %v601
        %v603 = vmul.f32 1.0, %v602
        %v604 = vld [vmem:[%s7] sm:$0xf]
        %v605 = vld [vmem:[%s8] sm:$0xf]
        %v606 = vmul.f32 %v438, %v605
        %v608 = vsel %vm440, %v604, 0
        %610 = vmatprep.subr.mxu0 0.0
        %611 = vmatpush1.msra.mxu0 0.0
        %612 = vmatprep.subr.mxu0 0.0
        %613 = vmatpush1.msra.mxu0 0.0
        %614 = vmatprep.subr.mxu0 0.0
        %615 = vmatpush1.msra.mxu0 0.0
        %616 = vmatprep.subr.mxu0 0.0
        %617 = vmatpush1.msra.mxu0 0.0
        %618 = vmatprep.subr.mxu0 0.0
        %619 = vmatpush1.msra.mxu0 0.0
        %620 = vmatprep.subr.mxu0 0.0
        %621 = vmatpush1.msra.mxu0 0.0
        %622 = vmatprep.subr.mxu0 0.0
        %623 = vmatpush1.msra.mxu0 0.0
        %624 = vmatprep.subr.mxu0 0.0
        %625 = vmatpush1.msra.mxu0 0.0
        %626 = vmatprep.subr.mxu0 0.0
        %627 = vmatpush1.msra.mxu0 0.0
        %628 = vmatprep.subr.mxu0 0.0
        %629 = vmatpush1.msra.mxu0 0.0
        %630 = vmatprep.subr.mxu0 0.0
        %631 = vmatpush1.msra.mxu0 0.0
        %632 = vmatprep.subr.mxu0 0.0
        %633 = vmatpush1.msra.mxu0 0.0
        %634 = vmatprep.subr.mxu0 0.0
        %635 = vmatpush1.msra.mxu0 0.0
        %636 = vmatprep.subr.mxu0 0.0
        %637 = vmatpush1.msra.mxu0 0.0
        %638 = vmatprep.subr.mxu0 0.0
        %639 = vmatpush1.msra.mxu0 0.0
        %640 = vmatprep.subr.mxu0 0.0
        %641 = vmatpush1.msra.mxu0 %v445
        %642 = vmatprep.subr.mxu0 0.0
        %643 = vmatpush2.msra.mxu0 0.0
        %644 = vmatprep.subr.mxu0 0.0
        %645 = vmatpush2.msra.mxu0 0.0
        %646 = vmatprep.subr.mxu0 0.0
        %647 = vmatpush2.msra.mxu0 0.0
        %648 = vmatprep.subr.mxu0 0.0
        %649 = vmatpush2.msra.mxu0 0.0
        %650 = vmatprep.subr.mxu0 0.0
        %651 = vmatpush2.msra.mxu0 0.0
        %652 = vmatprep.subr.mxu0 0.0
        %653 = vmatpush2.msra.mxu0 0.0
        %654 = vmatprep.subr.mxu0 0.0
        %655 = vmatpush2.msra.mxu0 0.0
        %656 = vmatprep.subr.mxu0 0.0
        %657 = vmatpush2.msra.mxu0 0.0
        %658 = vmatprep.subr.mxu0 0.0
        %659 = vmatpush2.msra.mxu0 0.0
        %660 = vmatprep.subr.mxu0 0.0
        %661 = vmatpush2.msra.mxu0 0.0
        %662 = vmatprep.subr.mxu0 0.0
        %663 = vmatpush2.msra.mxu0 0.0
        %664 = vmatprep.subr.mxu0 0.0
        %665 = vmatpush2.msra.mxu0 0.0
        %666 = vmatprep.subr.mxu0 0.0
        %667 = vmatpush2.msra.mxu0 0.0
        %668 = vmatprep.subr.mxu0 0.0
        %669 = vmatpush2.msra.mxu0 0.0
        %670 = vmatprep.subr.mxu0 0.0
        %671 = vmatpush2.msra.mxu0 0.0
        %672 = vmatprep.subr.mxu0 0.0
        %673 = vmatpush2.msra.mxu0 0.0
        %674 = vmatprep.mubr.f32.mxu0 0.0
        %675 = vmatmul.mubr.f32.gmra.mxu0 %v608
        %v676 = vpop.f32.mrf.mxu0
        %v677 = vadd.f32 %v606, %v676
        %v678 = vpop.f32.mrf.mxu0
        %679 = vdwg.mxu0
        %v680 = vld [vmem:[%s9] sm:$0xf]
        %v681 = vadd.f32 %v677, %v680
        %v682 = vmax.f32 %v681, 0.0
        %v683 = vld [vmem:[%s10] sm:$0xf]
        %v684 = vld [vmem:[%s11] sm:$0xf]
        %v686 = vsel %vm440, %v683, 0
        %v689 = vsel %vm428, %v682, 0
        %691 = vmatprep.subr.mxu0 0.0
        %692 = vmatpush1.msra.mxu0 0.0
        %693 = vmatprep.subr.mxu0 0.0
        %694 = vmatpush1.msra.mxu0 0.0
        %695 = vmatprep.subr.mxu0 0.0
        %696 = vmatpush1.msra.mxu0 0.0
        %697 = vmatprep.subr.mxu0 0.0
        %698 = vmatpush1.msra.mxu0 0.0
        %699 = vmatprep.subr.mxu0 0.0
        %700 = vmatpush1.msra.mxu0 0.0
        %701 = vmatprep.subr.mxu0 0.0
        %702 = vmatpush1.msra.mxu0 0.0
        %703 = vmatprep.subr.mxu0 0.0
        %704 = vmatpush1.msra.mxu0 0.0
        %705 = vmatprep.subr.mxu0 0.0
        %706 = vmatpush1.msra.mxu0 0.0
        %707 = vmatprep.subr.mxu0 0.0
        %708 = vmatpush1.msra.mxu0 0.0
        %709 = vmatprep.subr.mxu0 0.0
        %710 = vmatpush1.msra.mxu0 0.0
        %711 = vmatprep.subr.mxu0 0.0
        %712 = vmatpush1.msra.mxu0 0.0
        %713 = vmatprep.subr.mxu0 0.0
        %714 = vmatpush1.msra.mxu0 0.0
        %715 = vmatprep.subr.mxu0 0.0
        %716 = vmatpush1.msra.mxu0 0.0
        %717 = vmatprep.subr.mxu0 0.0
        %718 = vmatpush1.msra.mxu0 0.0
        %719 = vmatprep.subr.mxu0 0.0
        %720 = vmatpush1.msra.mxu0 0.0
        %721 = vmatprep.subr.mxu0 0.0
        %722 = vmatpush1.msra.mxu0 %v689
        %723 = vmatprep.subr.mxu0 0.0
        %724 = vmatpush2.msra.mxu0 0.0
        %725 = vmatprep.subr.mxu0 0.0
        %726 = vmatpush2.msra.mxu0 0.0
        %727 = vmatprep.subr.mxu0 0.0
        %728 = vmatpush2.msra.mxu0 0.0
        %729 = vmatprep.subr.mxu0 0.0
        %730 = vmatpush2.msra.mxu0 0.0
        %731 = vmatprep.subr.mxu0 0.0
        %732 = vmatpush2.msra.mxu0 0.0
        %733 = vmatprep.subr.mxu0 0.0
        %734 = vmatpush2.msra.mxu0 0.0
        %735 = vmatprep.subr.mxu0 0.0
        %736 = vmatpush2.msra.mxu0 0.0
        %737 = vmatprep.subr.mxu0 0.0
        %738 = vmatpush2.msra.mxu0 0.0
        %739 = vmatprep.subr.mxu0 0.0
        %740 = vmatpush2.msra.mxu0 0.0
        %741 = vmatprep.subr.mxu0 0.0
        %742 = vmatpush2.msra.mxu0 0.0
        %743 = vmatprep.subr.mxu0 0.0
        %744 = vmatpush2.msra.mxu0 0.0
        %745 = vmatprep.subr.mxu0 0.0
        %746 = vmatpush2.msra.mxu0 0.0
        %747 = vmatprep.subr.mxu0 0.0
        %748 = vmatpush2.msra.mxu0 0.0
        %749 = vmatprep.subr.mxu0 0.0
        %750 = vmatpush2.msra.mxu0 0.0
        %751 = vmatprep.subr.mxu0 0.0
        %752 = vmatpush2.msra.mxu0 0.0
        %753 = vmatprep.subr.mxu0 0.0
        %754 = vmatpush2.msra.mxu0 0.0
        %755 = vmatprep.mubr.f32.mxu0 0.0
        %756 = vmatmul.mubr.f32.gmra.mxu0 %v686
        %v757 = vpop.f32.mrf.mxu0
        %v758 = vadd.f32 %v684, %v757
        %v759 = vpop.f32.mrf.mxu0
        %760 = vdwg.mxu0
        %762 = vset.pattern.permute.xlu0 0
        %763 = vperm.xlu0 %762, %v603
        %v764 = vpop.permute.xlu0 %763
        %v766 = vunpack.c.l.s4 839922192
        %v767 = vunpack.c.0.s8 %v766
        %v768 = vlaneseq
        %v769 = vshrl.u32 %v768, 7
        %v770 = vsub.s32 %v767, %v769
        %v771 = vrot.slane %v764, %v770
        %v773 = vmul.f32 %v424, %v771
        %775 = vset.pattern.permute.xlu0 0
        %776 = vperm.xlu0 %775, %v758
        %v777 = vpop.permute.xlu0 %776
        %v779 = vunpack.c.l.s4 839922192
        %v780 = vunpack.c.0.s8 %v779
        %v781 = vlaneseq
        %v782 = vshrl.u32 %v781, 7
        %v783 = vsub.s32 %v780, %v782
        %v784 = vrot.slane %v777, %v783
        %v786 = vadd.f32 %v773, %v784
        %787 = vst [vmem:[%s418] sm:$0xff] %v786
        %s788 = sand.u32 %s292, 1
        %s789 = scalar_lea.sflag [#allocation3], %s788
        %s790 = sand.u32 %s292, 1
        %s791 = smul.addr %s790, 8
        %s792 = scalar_lea.vmem [#allocation5], %s791
        // Predicated region
        $region73: #{tpu_custom_call.1} parent=67 // pred_check
          %p793 = pneg %p302
        $region74: #{tpu_custom_call.1} parent=67 // pred_check_branch
          %795 = sbr.rel (%p793) target = $region76
        $region75: #{tpu_custom_call.1} parent=67 // pred_region
          %s797 = ssub.s32 128, 128
          %798 = vsyncadd %s789, %s797
          %s799 = smul.addr %s27, 2
          %s800 = smul.addr %s799, 64
          %s801 = scalar_lea.hbm %s12, %s800
          %s803 = sshll.u32 %s792, 4
          %s804 = int_to_ptr.vmem [resolvable:$true] %s803
          %806 = dma.vmem_to_hbm [thread:$0]  %s804, 128, %s801, %s789
        $region76: #{tpu_custom_call.1} parent=67 // pred_fallthru
          _
      $region68: #{tpu_custom_call.1} parent=5 // pred_fallthru
        _
      %p807 = scmp.le.s32.totalorder 2, %s22
      // Predicated region
      $region77: #{tpu_custom_call.1} parent=5 // pred_check
        %p808 = pneg %p807
      $region78: #{tpu_custom_call.1} parent=5 // pred_check_branch
        %810 = sbr.rel (%p808) target = $region80
      $region79: #{tpu_custom_call.1} parent=5 // pred_region
        %s811 = ssub.s32 %s22, 2
        // Predicated region
        $region81: #{tpu_custom_call.1} parent=79 // pred_check
          %p812 = pneg %p308
        $region82: #{tpu_custom_call.1} parent=79 // pred_check_branch
          %814 = sbr.rel (%p812) target = $region84
        $region83: #{tpu_custom_call.1} parent=79 // pred_region
          %s815 = sand.u32 %s293, 1
          %s816 = scalar_lea.sflag [#allocation3], %s815
          %s817 = sand.u32 %s293, 1
          %s818 = smul.addr %s817, 8
          %s819 = scalar_lea.vmem [#allocation5], %s818
          %820 = dma.done %s816, 128
        $region84: #{tpu_custom_call.1} parent=79 // pred_fallthru
          _
      $region80: #{tpu_custom_call.1} parent=5 // pred_fallthru
        _
    $region6: #{tpu_custom_call.1} parent=1 // loop_footer
      %s26 = sadd.s32 1, %s22
    $region7: #{tpu_custom_call.1} parent=1 // loop_footer_branch
      %21 = sbr.rel target = $region3
    $region8: #{tpu_custom_call.1} parent=1 // loop_exit
      _
    %821 = vsyncpa [#allocation3], 1
    %s822 = scalar_lea.sflag [#allocation3], 1
    %823 = vsyncpa %s822, 1
    %824 = vsyncpa [#allocation4], 1
    %s825 = scalar_lea.sflag [#allocation4], 1
    %826 = vsyncpa %s825, 1

</llo_original>
